<compile_context>
chip_gen: v6e
topology: v6e:2x2x1
jax: 0.10.0
libtpu: 0.0.40
codegen_flags: <defaults>
</compile_context>

<pallas_src>
import functools

import jax
import jax.numpy as jnp
from jax.experimental import pallas as pl
from jax.experimental.pallas import tpu as pltpu

# ---------------- hyper-parameters (consistent with Interpolationlr) ----------
HIDDEN_DIMS = 32
Z1_DIMS = 8
Z2_DIMS = 8
OUT_DIMS = 128          # linear_out_0 / linear_out_1 output width (fixed)
N_STEP = 8              # self.n_step = n_step + n_middle (unused by forward)
N_MIDDLE = 4
BATCH = 2

_VMEM = pl.BlockSpec(memory_space=pltpu.MemorySpace.VMEM)

# Slab layouts (lane offsets), H = 32:
#   gate slabs Wi*/Wh*: N = 6H = 192 columns laid out
#       [r_rhythm | r_pitch | z_rhythm | z_pitch | n_rhythm | n_pitch]
#     with block-diagonal rows: rows [0:in_r) = rhythm weights,
#     rows [in_r:in_r+in_p) = pitch weights (zeros elsewhere).
#   W_init (16, 64): rows 0:8 -> linear_init_0 into lanes 0:32 (rhythm),
#                    rows 8:16 -> linear_init_1 into lanes 32:64 (pitch).
#   W_out (64, 256): rows 0:32 -> linear_out_0 into lanes 0:128 (z_r),
#                    rows 32:64 -> linear_out_1 into lanes 128:256 (z_p).
#   bias slab (8, 256):
#     row 0: layer-1 gate bias (192): [(b_ir+b_hr) | (b_iz+b_hz) | b_in] x2 branches
#     row 1: layer-1 b_hn (64)
#     row 2: layer-2 gate bias (192)
#     row 3: layer-2 b_hn (64)
#     row 4: [b_out0 | b_out1] (256)
#     row 5: [b_init0 | b_init1] (64)


# ---------------- fused kernel -------------------------------------------------
def interp_kernel(*refs, is_first):
    if is_first:
        (acts_ref, w_init_ref, wi1_ref, wh1_ref,
         wi2_ref, wh2_ref, wout_ref, bias_ref, out_ref) = refs
    else:
        (acts_ref, wi1_ref, wh1_ref,
         wi2_ref, wh2_ref, wout_ref, bias_ref, out_ref) = refs
        w_init_ref = None

    H = HIDDEN_DIMS
    bias = bias_ref[...]                                     # (8, 256) f32

    def bdot(x, w_ref):
        # bf16 MXU operands, f32 accumulation.
        return jnp.dot(x.astype(jnp.bfloat16), w_ref[...],
                       preferred_element_type=jnp.float32)

    x1 = acts_ref[:, 0:16]                                   # [zr | zp]  (B, 16)
    if is_first:
        init_in = acts_ref[:, 16:32]                         # [zr8 | zp8]
        h0 = bdot(init_in, w_init_ref) + bias[5:6, 0:2 * H]  # (B, 64)
        h_prev2_ext = None
    else:
        h0 = acts_ref[:, 16:16 + 2 * H]                      # [hr  | hp ]
        h_prev2_ext = acts_ref[:, 16 + 2 * H:16 + 4 * H]     # [hr1 | hp1]

    def gru_layer(x, h, wi_ref, wh_ref, b_gates, b_hn):
        # PyTorch GRUCell math, both branches at once (lanes [0:32)=rhythm,
        # [32:64)=pitch).  b_gates already contains the folded b_ir+b_hr /
        # b_iz+b_hz and b_in; b_hn stays inside the r-gated term.
        gx = bdot(x, wi_ref) + b_gates                       # (B, 192)
        gh = bdot(h, wh_ref)                                 # (B, 192)
        r = jax.nn.sigmoid(gx[:, 0:2 * H] + gh[:, 0:2 * H])
        z = jax.nn.sigmoid(gx[:, 2 * H:4 * H] + gh[:, 2 * H:4 * H])
        n = jnp.tanh(gx[:, 4 * H:6 * H] + r * (gh[:, 4 * H:6 * H] + b_hn))
        return (1.0 - z) * n + z * h                         # (B, 64)

    h1 = gru_layer(x1, h0, wi1_ref, wh1_ref,
                   bias[0:1, 0:6 * H], bias[1:2, 0:2 * H])   # [hr0  | hp0 ]
    h_prev2 = h1 if is_first else h_prev2_ext
    h2 = gru_layer(h1, h_prev2, wi2_ref, wh2_ref,
                   bias[2:3, 0:6 * H], bias[3:4, 0:2 * H])   # [hr_1 | hp_1]

    zout = bdot(h2, wout_ref) + bias[4:5, :]                 # (B, 256) = [z_r | z_p]

    # single lane-dense (B, 384) output slab; static sub-slice stores (no concat)
    out_ref[:, 0:2 * OUT_DIMS] = zout
    out_ref[:, 2 * OUT_DIMS:2 * OUT_DIMS + 2 * H] = h1
    out_ref[:, 2 * OUT_DIMS + 2 * H:2 * OUT_DIMS + 4 * H] = h2


# ---------------- wrapper ------------------------------------------------------
@functools.partial(jax.jit, static_argnames=("i",))
def interpolation_forward(zp, zr, zp8, zr8, n1, n2, hp, hp1, hr, hr1, packed, *, i):
    """Matches Interpolationlr.forward(zp, zr, zp8, zr8, n1, n2, hp, hp1, hr, hr1, i)."""
    del n1, n2                          # unused by the PyTorch forward as well
    B = zp.shape[0]
    H = HIDDEN_DIMS

    if i == 0:
        acts = jnp.concatenate([zr, zp, zr8, zp8], axis=1)            # (B, 32)
        operands = (acts, packed["w_init"], packed["wi1"], packed["wh1"],
                    packed["wi2"], packed["wh2"], packed["w_out"], packed["bias"])
    else:
        acts = jnp.concatenate([zr, zp, hr, hp, hr1, hp1], axis=1)    # (B, 144)
        operands = (acts, packed["wi1"], packed["wh1"],
                    packed["wi2"], packed["wh2"], packed["w_out"], packed["bias"])

    out = pl.pallas_call(
        functools.partial(interp_kernel, is_first=(i == 0)),
        out_shape=jax.ShapeDtypeStruct((B, 2 * OUT_DIMS + 4 * H), jnp.float32),
        in_specs=[_VMEM] * len(operands),
        out_specs=_VMEM,
    )(*operands)

    z_r = out[:, 0:OUT_DIMS]
    z_p = out[:, OUT_DIMS:2 * OUT_DIMS]
    hr0 = out[:, 2 * OUT_DIMS:2 * OUT_DIMS + H]
    hp0 = out[:, 2 * OUT_DIMS + H:2 * OUT_DIMS + 2 * H]
    hr_1 = out[:, 2 * OUT_DIMS + 2 * H:2 * OUT_DIMS + 3 * H]
    hp_1 = out[:, 2 * OUT_DIMS + 3 * H:2 * OUT_DIMS + 4 * H]
    return z_p, hp0, hp_1, z_r, hr0, hr_1


# ---------------- parameter construction & host-side packing ------------------
def make_raw_params(seed=42):
    """Per-module parameters (PyTorch-style), used by the pure-JAX reference."""
    H = HIDDEN_DIMS
    keys = iter(jax.random.split(jax.random.PRNGKey(seed), 64))

    def uniform(shape, scale):
        return jax.random.uniform(next(keys), shape, jnp.float32, -scale, scale)

    def linear(in_dim, out_dim):
        s = 1.0 / float(in_dim) ** 0.5
        return uniform((in_dim, out_dim), s), uniform((out_dim,), s)

    def gru(in_dim):
        s = 1.0 / float(H) ** 0.5
        return dict(
            w_ir=uniform((in_dim, H), s), w_iz=uniform((in_dim, H), s),
            w_in=uniform((in_dim, H), s),
            w_hr=uniform((H, H), s), w_hz=uniform((H, H), s), w_hn=uniform((H, H), s),
            b_ir=uniform((H,), s), b_iz=uniform((H,), s), b_in=uniform((H,), s),
            b_hr=uniform((H,), s), b_hz=uniform((H,), s), b_hn=uniform((H,), s))

    init0_w, init0_b = linear(Z2_DIMS, H)    # linear_init_0
    init1_w, init1_b = linear(Z1_DIMS, H)    # linear_init_1
    out0_w, out0_b = linear(H, OUT_DIMS)     # linear_out_0
    out1_w, out1_b = linear(H, OUT_DIMS)     # linear_out_1
    return dict(init0_w=init0_w, init0_b=init0_b, init1_w=init1_w, init1_b=init1_b,
                gru1=gru(Z2_DIMS), gru2=gru(H), gru3=gru(Z1_DIMS), gru4=gru(H),
                out0_w=out0_w, out0_b=out0_b, out1_w=out1_w, out1_b=out1_b)


def pack_params(raw, weight_dtype=jnp.bfloat16):
    """Pack raw params into the lane-dense slabs consumed by the kernel."""
    H = HIDDEN_DIMS

    def gate_slab(g_r, g_p, names, in_r, in_p):
        W = jnp.zeros((in_r + in_p, 6 * H), jnp.float32)
        for gi, name in enumerate(names):     # gi: 0=r, 1=z, 2=n
            c = 2 * gi * H
            W = W.at[:in_r, c:c + H].set(g_r[name])          # rhythm branch
            W = W.at[in_r:, c + H:c + 2 * H].set(g_p[name])  # pitch branch
        return W

    wi1 = gate_slab(raw["gru1"], raw["gru3"], ("w_ir", "w_iz", "w_in"), Z2_DIMS, Z1_DIMS)
    wh1 = gate_slab(raw["gru1"], raw["gru3"], ("w_hr", "w_hz", "w_hn"), H, H)
    wi2 = gate_slab(raw["gru2"], raw["gru4"], ("w_ir", "w_iz", "w_in"), H, H)
    wh2 = gate_slab(raw["gru2"], raw["gru4"], ("w_hr", "w_hz", "w_hn"), H, H)

    w_init = jnp.zeros((Z2_DIMS + Z1_DIMS, 2 * H), jnp.float32)
    w_init = w_init.at[:Z2_DIMS, :H].set(raw["init0_w"])
    w_init = w_init.at[Z2_DIMS:, H:].set(raw["init1_w"])

    w_out = jnp.zeros((2 * H, 2 * OUT_DIMS), jnp.float32)
    w_out = w_out.at[:H, :OUT_DIMS].set(raw["out0_w"])
    w_out = w_out.at[H:, OUT_DIMS:].set(raw["out1_w"])

    def bias_gates(g_r, g_p):
        # folded r/z biases + input n bias, layout [r_r r_p z_r z_p n_r n_p]
        return jnp.concatenate([
            g_r["b_ir"] + g_r["b_hr"], g_p["b_ir"] + g_p["b_hr"],
            g_r["b_iz"] + g_r["b_hz"], g_p["b_iz"] + g_p["b_hz"],
            g_r["b_in"], g_p["b_in"]])

    bias = jnp.zeros((8, 2 * OUT_DIMS), jnp.float32)
    bias = bias.at[0, :6 * H].set(bias_gates(raw["gru1"], raw["gru3"]))
    bias = bias.at[1, :2 * H].set(jnp.concatenate([raw["gru1"]["b_hn"], raw["gru3"]["b_hn"]]))
    bias = bias.at[2, :6 * H].set(bias_gates(raw["gru2"], raw["gru4"]))
    bias = bias.at[3, :2 * H].set(jnp.concatenate([raw["gru2"]["b_hn"], raw["gru4"]["b_hn"]]))
    bias = bias.at[4, :].set(jnp.concatenate([raw["out0_b"], raw["out1_b"]]))
    bias = bias.at[5, :2 * H].set(jnp.concatenate([raw["init0_b"], raw["init1_b"]]))

    dt = weight_dtype
    return dict(w_init=w_init.astype(dt), wi1=wi1.astype(dt), wh1=wh1.astype(dt),
                wi2=wi2.astype(dt), wh2=wh2.astype(dt), w_out=w_out.astype(dt),
                bias=bias)                                   # biases stay f32


# ---------------- pure-JAX reference (for correctness check) ------------------
def _gru_ref(x, h, g):
    r = jax.nn.sigmoid(x @ g["w_ir"] + g["b_ir"] + h @ g["w_hr"] + g["b_hr"])
    z = jax.nn.sigmoid(x @ g["w_iz"] + g["b_iz"] + h @ g["w_hz"] + g["b_hz"])
    n = jnp.tanh(x @ g["w_in"] + g["b_in"] + r * (h @ g["w_hn"] + g["b_hn"]))
    return (1.0 - z) * n + z * h


def reference_forward(zp, zr, zp8, zr8, hp, hp1, hr, hr1, raw, i):
    h_r = zr8 @ raw["init0_w"] + raw["init0_b"] if i == 0 else hr
    hr0 = _gru_ref(zr, h_r, raw["gru1"])
    hr_1 = _gru_ref(hr0, hr0 if i == 0 else hr1, raw["gru2"])
    z_r = hr_1 @ raw["out0_w"] + raw["out0_b"]

    h_p = zp8 @ raw["init1_w"] + raw["init1_b"] if i == 0 else hp
    hp0 = _gru_ref(zp, h_p, raw["gru3"])
    hp_1 = _gru_ref(hp0, hp0 if i == 0 else hp1, raw["gru4"])
    z_p = hp_1 @ raw["out1_w"] + raw["out1_b"]
    return z_p, hp0, hp_1, z_r, hr0, hr_1


# ---------------- main --------------------------------------------------------
if __name__ == "__main__":
    key = jax.random.PRNGKey(0)
    ks = jax.random.split(key, 10)
    B = BATCH

    zp = jax.random.normal(ks[0], (B, Z1_DIMS), jnp.float32)
    zr = jax.random.normal(ks[1], (B, Z2_DIMS), jnp.float32)
    zp8 = jax.random.normal(ks[2], (B, Z1_DIMS), jnp.float32)
    zr8 = jax.random.normal(ks[3], (B, Z2_DIMS), jnp.float32)
    n1 = jax.random.normal(ks[4], (B, Z1_DIMS), jnp.float32)    # unused by forward
    n2 = jax.random.normal(ks[5], (B, Z2_DIMS), jnp.float32)    # unused by forward
    hp = jax.random.normal(ks[6], (B, HIDDEN_DIMS), jnp.float32)
    hp1 = jax.random.normal(ks[7], (B, HIDDEN_DIMS), jnp.float32)
    hr = jax.random.normal(ks[8], (B, HIDDEN_DIMS), jnp.float32)
    hr1 = jax.random.normal(ks[9], (B, HIDDEN_DIMS), jnp.float32)

    raw = make_raw_params(seed=42)
    packed = pack_params(raw)

    for step_i in (0, 3):       # exercise both the i == 0 and i != 0 paths
        out = interpolation_forward(zp, zr, zp8, zr8, n1, n2,
                                    hp, hp1, hr, hr1, packed, i=step_i)
        out = jax.block_until_ready(out)
        z_p, hp0, hp_1, z_r, hr0, hr_1 = out

        assert z_p.shape == (B, OUT_DIMS) and z_r.shape == (B, OUT_DIMS)
        assert hp0.shape == (B, HIDDEN_DIMS) and hp_1.shape == (B, HIDDEN_DIMS)
        assert hr0.shape == (B, HIDDEN_DIMS) and hr_1.shape == (B, HIDDEN_DIMS)
        assert all(bool(jnp.all(jnp.isfinite(o))) for o in out)

        ref = reference_forward(zp, zr, zp8, zr8, hp, hp1, hr, hr1, raw, step_i)
        for got, want in zip(out, ref):
            # bf16 MXU operands vs. full-f32 reference -> 2e-2 tolerance
            err = float(jnp.max(jnp.abs(got - want)))
            assert bool(jnp.allclose(got, want, rtol=2e-2, atol=2e-2)), err

    print("KERNEL_OK")
</pallas_src>

<mosaic_0001>
module attributes {stable_mosaic.version = 11 : i64} {
  func.func @interp_kernel(%arg0: memref<2x32xf32, #tpu.memory_space<vmem>>, %arg1: memref<16x64xbf16, #tpu.memory_space<vmem>>, %arg2: memref<16x192xbf16, #tpu.memory_space<vmem>>, %arg3: memref<64x192xbf16, #tpu.memory_space<vmem>>, %arg4: memref<64x192xbf16, #tpu.memory_space<vmem>>, %arg5: memref<64x192xbf16, #tpu.memory_space<vmem>>, %arg6: memref<64x256xbf16, #tpu.memory_space<vmem>>, %arg7: memref<8x256xf32, #tpu.memory_space<vmem>>, %arg8: memref<2x384xf32, #tpu.memory_space<vmem>>) attributes {dimension_semantics = [], scalar_prefetch = 0 : i64, scratch_operands = 0 : i64, tpu.core_type = #tpu.core_type<tc>} {
    %c0 = arith.constant 0 : index
    %c0_0 = arith.constant 0 : index
    %0 = vector.load %arg7[%c0, %c0_0] : memref<8x256xf32, #tpu.memory_space<vmem>>, vector<8x256xf32>
    %c0_1 = arith.constant 0 : index
    %c0_2 = arith.constant 0 : index
    %1 = vector.load %arg0[%c0_1, %c0_2] : memref<2x32xf32, #tpu.memory_space<vmem>>, vector<2x16xf32>
    %c0_3 = arith.constant 0 : index
    %c16 = arith.constant 16 : index
    %2 = vector.load %arg0[%c0_3, %c16] : memref<2x32xf32, #tpu.memory_space<vmem>>, vector<2x16xf32>
    %3 = arith.truncf %2 : vector<2x16xf32> to vector<2x16xbf16>
    %c0_4 = arith.constant 0 : index
    %c0_5 = arith.constant 0 : index
    %4 = vector.load %arg1[%c0_4, %c0_5] : memref<16x64xbf16, #tpu.memory_space<vmem>>, vector<16x64xbf16>
    %cst = arith.constant dense<0.000000e+00> : vector<2x64xf32>
    %5 = tpu.matmul %3, %4, %cst {dimension_numbers = #tpu.dot_dimension_numbers<[1], [0], [0], [1], [0, 0, 1, 1], [], []>} : vector<2x16xbf16>, vector<16x64xbf16>, vector<2x64xf32> -> vector<2x64xf32>
    %6 = vector.extract_strided_slice %0 {offsets = [5, 0], sizes = [1, 64], strides = [1, 1]} : vector<8x256xf32> to vector<1x64xf32>
    %7 = vector.broadcast %6 : vector<1x64xf32> to vector<2x64xf32>
    %8 = arith.addf %5, %7 : vector<2x64xf32>
    %9 = vector.extract_strided_slice %0 {offsets = [0, 0], sizes = [1, 192], strides = [1, 1]} : vector<8x256xf32> to vector<1x192xf32>
    %10 = vector.extract_strided_slice %0 {offsets = [1, 0], sizes = [1, 64], strides = [1, 1]} : vector<8x256xf32> to vector<1x64xf32>
    %11 = arith.truncf %1 : vector<2x16xf32> to vector<2x16xbf16>
    %c0_6 = arith.constant 0 : index
    %c0_7 = arith.constant 0 : index
    %12 = vector.load %arg2[%c0_6, %c0_7] : memref<16x192xbf16, #tpu.memory_space<vmem>>, vector<16x192xbf16>
    %cst_8 = arith.constant dense<0.000000e+00> : vector<2x192xf32>
    %13 = tpu.matmul %11, %12, %cst_8 {dimension_numbers = #tpu.dot_dimension_numbers<[1], [0], [0], [1], [0, 0, 1, 1], [], []>} : vector<2x16xbf16>, vector<16x192xbf16>, vector<2x192xf32> -> vector<2x192xf32>
    %14 = vector.broadcast %9 : vector<1x192xf32> to vector<2x192xf32>
    %15 = arith.addf %13, %14 : vector<2x192xf32>
    %16 = arith.truncf %8 : vector<2x64xf32> to vector<2x64xbf16>
    %c0_9 = arith.constant 0 : index
    %c0_10 = arith.constant 0 : index
    %17 = vector.load %arg3[%c0_9, %c0_10] : memref<64x192xbf16, #tpu.memory_space<vmem>>, vector<64x192xbf16>
    %cst_11 = arith.constant dense<0.000000e+00> : vector<2x192xf32>
    %18 = tpu.matmul %16, %17, %cst_11 {dimension_numbers = #tpu.dot_dimension_numbers<[1], [0], [0], [1], [0, 0, 1, 1], [], []>} : vector<2x64xbf16>, vector<64x192xbf16>, vector<2x192xf32> -> vector<2x192xf32>
    %19 = vector.extract_strided_slice %15 {offsets = [0, 0], sizes = [2, 64], strides = [1, 1]} : vector<2x192xf32> to vector<2x64xf32>
    %20 = vector.extract_strided_slice %18 {offsets = [0, 0], sizes = [2, 64], strides = [1, 1]} : vector<2x192xf32> to vector<2x64xf32>
    %21 = arith.addf %19, %20 : vector<2x64xf32>
    %22 = arith.negf %21 : vector<2x64xf32>
    %23 = math.exp %22 : vector<2x64xf32>
    %cst_12 = arith.constant 1.000000e+00 : f32
    %24 = vector.broadcast %cst_12 : f32 to vector<2x64xf32>
    %25 = arith.addf %24, %23 : vector<2x64xf32>
    %26 = arith.divf %24, %25 : vector<2x64xf32>
    %27 = vector.extract_strided_slice %15 {offsets = [0, 64], sizes = [2, 64], strides = [1, 1]} : vector<2x192xf32> to vector<2x64xf32>
    %28 = vector.extract_strided_slice %18 {offsets = [0, 64], sizes = [2, 64], strides = [1, 1]} : vector<2x192xf32> to vector<2x64xf32>
    %29 = arith.addf %27, %28 : vector<2x64xf32>
    %30 = arith.negf %29 : vector<2x64xf32>
    %31 = math.exp %30 : vector<2x64xf32>
    %cst_13 = arith.constant 1.000000e+00 : f32
    %32 = vector.broadcast %cst_13 : f32 to vector<2x64xf32>
    %33 = arith.addf %32, %31 : vector<2x64xf32>
    %34 = arith.divf %32, %33 : vector<2x64xf32>
    %35 = vector.extract_strided_slice %15 {offsets = [0, 128], sizes = [2, 64], strides = [1, 1]} : vector<2x192xf32> to vector<2x64xf32>
    %36 = vector.extract_strided_slice %18 {offsets = [0, 128], sizes = [2, 64], strides = [1, 1]} : vector<2x192xf32> to vector<2x64xf32>
    %37 = vector.broadcast %10 : vector<1x64xf32> to vector<2x64xf32>
    %38 = arith.addf %36, %37 : vector<2x64xf32>
    %39 = arith.mulf %26, %38 : vector<2x64xf32>
    %40 = arith.addf %35, %39 : vector<2x64xf32>
    %41 = math.tanh %40 : vector<2x64xf32>
    %cst_14 = arith.constant 1.000000e+00 : f32
    %42 = vector.broadcast %cst_14 : f32 to vector<2x64xf32>
    %43 = arith.subf %42, %34 : vector<2x64xf32>
    %44 = arith.mulf %43, %41 : vector<2x64xf32>
    %45 = arith.mulf %34, %8 : vector<2x64xf32>
    %46 = arith.addf %44, %45 : vector<2x64xf32>
    %47 = vector.extract_strided_slice %0 {offsets = [2, 0], sizes = [1, 192], strides = [1, 1]} : vector<8x256xf32> to vector<1x192xf32>
    %48 = vector.extract_strided_slice %0 {offsets = [3, 0], sizes = [1, 64], strides = [1, 1]} : vector<8x256xf32> to vector<1x64xf32>
    %49 = arith.truncf %46 : vector<2x64xf32> to vector<2x64xbf16>
    %c0_15 = arith.constant 0 : index
    %c0_16 = arith.constant 0 : index
    %50 = vector.load %arg4[%c0_15, %c0_16] : memref<64x192xbf16, #tpu.memory_space<vmem>>, vector<64x192xbf16>
    %cst_17 = arith.constant dense<0.000000e+00> : vector<2x192xf32>
    %51 = tpu.matmul %49, %50, %cst_17 {dimension_numbers = #tpu.dot_dimension_numbers<[1], [0], [0], [1], [0, 0, 1, 1], [], []>} : vector<2x64xbf16>, vector<64x192xbf16>, vector<2x192xf32> -> vector<2x192xf32>
    %52 = vector.broadcast %47 : vector<1x192xf32> to vector<2x192xf32>
    %53 = arith.addf %51, %52 : vector<2x192xf32>
    %54 = arith.truncf %46 : vector<2x64xf32> to vector<2x64xbf16>
    %c0_18 = arith.constant 0 : index
    %c0_19 = arith.constant 0 : index
    %55 = vector.load %arg5[%c0_18, %c0_19] : memref<64x192xbf16, #tpu.memory_space<vmem>>, vector<64x192xbf16>
    %cst_20 = arith.constant dense<0.000000e+00> : vector<2x192xf32>
    %56 = tpu.matmul %54, %55, %cst_20 {dimension_numbers = #tpu.dot_dimension_numbers<[1], [0], [0], [1], [0, 0, 1, 1], [], []>} : vector<2x64xbf16>, vector<64x192xbf16>, vector<2x192xf32> -> vector<2x192xf32>
    %57 = vector.extract_strided_slice %53 {offsets = [0, 0], sizes = [2, 64], strides = [1, 1]} : vector<2x192xf32> to vector<2x64xf32>
    %58 = vector.extract_strided_slice %56 {offsets = [0, 0], sizes = [2, 64], strides = [1, 1]} : vector<2x192xf32> to vector<2x64xf32>
    %59 = arith.addf %57, %58 : vector<2x64xf32>
    %60 = arith.negf %59 : vector<2x64xf32>
    %61 = math.exp %60 : vector<2x64xf32>
    %cst_21 = arith.constant 1.000000e+00 : f32
    %62 = vector.broadcast %cst_21 : f32 to vector<2x64xf32>
    %63 = arith.addf %62, %61 : vector<2x64xf32>
    %64 = arith.divf %62, %63 : vector<2x64xf32>
    %65 = vector.extract_strided_slice %53 {offsets = [0, 64], sizes = [2, 64], strides = [1, 1]} : vector<2x192xf32> to vector<2x64xf32>
    %66 = vector.extract_strided_slice %56 {offsets = [0, 64], sizes = [2, 64], strides = [1, 1]} : vector<2x192xf32> to vector<2x64xf32>
    %67 = arith.addf %65, %66 : vector<2x64xf32>
    %68 = arith.negf %67 : vector<2x64xf32>
    %69 = math.exp %68 : vector<2x64xf32>
    %cst_22 = arith.constant 1.000000e+00 : f32
    %70 = vector.broadcast %cst_22 : f32 to vector<2x64xf32>
    %71 = arith.addf %70, %69 : vector<2x64xf32>
    %72 = arith.divf %70, %71 : vector<2x64xf32>
    %73 = vector.extract_strided_slice %53 {offsets = [0, 128], sizes = [2, 64], strides = [1, 1]} : vector<2x192xf32> to vector<2x64xf32>
    %74 = vector.extract_strided_slice %56 {offsets = [0, 128], sizes = [2, 64], strides = [1, 1]} : vector<2x192xf32> to vector<2x64xf32>
    %75 = vector.broadcast %48 : vector<1x64xf32> to vector<2x64xf32>
    %76 = arith.addf %74, %75 : vector<2x64xf32>
    %77 = arith.mulf %64, %76 : vector<2x64xf32>
    %78 = arith.addf %73, %77 : vector<2x64xf32>
    %79 = math.tanh %78 : vector<2x64xf32>
    %cst_23 = arith.constant 1.000000e+00 : f32
    %80 = vector.broadcast %cst_23 : f32 to vector<2x64xf32>
    %81 = arith.subf %80, %72 : vector<2x64xf32>
    %82 = arith.mulf %81, %79 : vector<2x64xf32>
    %83 = arith.mulf %72, %46 : vector<2x64xf32>
    %84 = arith.addf %82, %83 : vector<2x64xf32>
    %85 = arith.truncf %84 : vector<2x64xf32> to vector<2x64xbf16>
    %c0_24 = arith.constant 0 : index
    %c0_25 = arith.constant 0 : index
    %86 = vector.load %arg6[%c0_24, %c0_25] : memref<64x256xbf16, #tpu.memory_space<vmem>>, vector<64x256xbf16>
    %cst_26 = arith.constant dense<0.000000e+00> : vector<2x256xf32>
    %87 = tpu.matmul %85, %86, %cst_26 {dimension_numbers = #tpu.dot_dimension_numbers<[1], [0], [0], [1], [0, 0, 1, 1], [], []>} : vector<2x64xbf16>, vector<64x256xbf16>, vector<2x256xf32> -> vector<2x256xf32>
    %88 = vector.extract_strided_slice %0 {offsets = [4, 0], sizes = [1, 256], strides = [1, 1]} : vector<8x256xf32> to vector<1x256xf32>
    %89 = vector.broadcast %88 : vector<1x256xf32> to vector<2x256xf32>
    %90 = arith.addf %87, %89 : vector<2x256xf32>
    %c0_27 = arith.constant 0 : index
    %c0_28 = arith.constant 0 : index
    %91 = vector.load %arg8[%c0_27, %c0_28] : memref<2x384xf32, #tpu.memory_space<vmem>>, vector<2x256xf32>
    tpu.vector_store %arg8[%c0_27, %c0_28], %90 {strides = array<i32>} : memref<2x384xf32, #tpu.memory_space<vmem>>, vector<2x256xf32>,
    %c0_29 = arith.constant 0 : index
    %c256 = arith.constant 256 : index
    %92 = vector.load %arg8[%c0_29, %c256] : memref<2x384xf32, #tpu.memory_space<vmem>>, vector<2x64xf32>
    tpu.vector_store %arg8[%c0_29, %c256], %46 {strides = array<i32>} : memref<2x384xf32, #tpu.memory_space<vmem>>, vector<2x64xf32>,
    %c0_30 = arith.constant 0 : index
    %c320 = arith.constant 320 : index
    %93 = vector.load %arg8[%c0_30, %c320] : memref<2x384xf32, #tpu.memory_space<vmem>>, vector<2x64xf32>
    tpu.vector_store %arg8[%c0_30, %c320], %84 {strides = array<i32>} : memref<2x384xf32, #tpu.memory_space<vmem>>, vector<2x64xf32>,
    return
  }
}

</mosaic_0001>

<llo_original>
// kernel: interpolation_forward.1
$region0: #{interpolation_forward.1}
  #allocation0 [shape = 'u32[]', space=smem, size = 0x4, offset = 0x4, fixed_abs, tag = 'smem constant byte address 0x4 - core index']
  #allocation1 [shape = 'u32[144,128]{1,0:T(1,128)}', space=vmem, size = 0x12000, scoped, tag = 'internal scratch']
  %s0 = inlined_call_operand.vmem [shape: f32[2,32], index: 0, kind: input, shape index: {}]
  %s1 = inlined_call_operand.vmem [shape: bf16[16,64], index: 1, kind: input, shape index: {}]
  %s2 = inlined_call_operand.vmem [shape: bf16[16,192], index: 2, kind: input, shape index: {}]
  %s3 = inlined_call_operand.hbm [shape: bf16[64,192], index: 3, kind: input, shape index: {}]
  %s4 = inlined_call_operand.hbm [shape: bf16[64,192], index: 4, kind: input, shape index: {}]
  %s5 = inlined_call_operand.hbm [shape: bf16[64,192], index: 5, kind: input, shape index: {}]
  %s6 = inlined_call_operand.hbm [shape: bf16[64,256], index: 6, kind: input, shape index: {}]
  %s7 = inlined_call_operand.hbm [shape: f32[8,256], index: 7, kind: input, shape index: {}]
  %s8 = inlined_call_operand.vmem [shape: f32[2,384], index: 8, kind: output, shape index: {}]
  %s9 = sld [smem:[#allocation0]]
  $region62: #{interpolation_forward.1} parent=0
    _
  %s11 = ssub.s32 1, %s9
  %s12 = scalar_select 0, %s11, %s9
  $region1: #{interpolation_forward.1} parent=0
    #allocation2 [shape = 'u8[32768]{0}', space=vmem, size = 0x8000, scoped, tag = 'input window, operand 3, single buffered']
    #allocation3 [shape = 's32[1]{0}', space=sflag, size = 0x4, scoped, tag = 'scoped memory for interpolation_forward.1']
    #allocation4 [shape = 'u8[32768]{0}', space=vmem, size = 0x8000, scoped, tag = 'input window, operand 4, single buffered']
    #allocation5 [shape = 's32[1]{0}', space=sflag, size = 0x4, scoped, tag = 'scoped memory for interpolation_forward.1']
    #allocation6 [shape = 'u8[32768]{0}', space=vmem, size = 0x8000, scoped, tag = 'input window, operand 5, single buffered']
    #allocation7 [shape = 'u8[32768]{0}', space=vmem, size = 0x8000, scoped, tag = 'input window, operand 6, single buffered']
    #allocation8 [shape = 's32[1]{0}', space=sflag, size = 0x4, scoped, tag = 'scoped memory for interpolation_forward.1']
    #allocation9 [shape = 'u8[8192]{0}', space=vmem, size = 0x2000, scoped, tag = 'input window, operand 7, single buffered']
    %13 = vsyncpa [#allocation3], 0
    %14 = vsyncpa [#allocation5], 0
    %15 = vsyncpa [#allocation8], 0
    // Predicated region
    $region2: #{interpolation_forward.1} parent=1 // pred_check
      _
    $region3: #{interpolation_forward.1} parent=1 // pred_check_branch
      %17 = sbr.rel (0) target = $region5
    $region4: #{interpolation_forward.1} parent=1 // pred_region
      _
    $region5: #{interpolation_forward.1} parent=1 // pred_fallthru
      _
    // Predicated region
    $region6: #{interpolation_forward.1} parent=1 // pred_check
      _
    $region7: #{interpolation_forward.1} parent=1 // pred_check_branch
      %19 = sbr.rel (0) target = $region9
    $region8: #{interpolation_forward.1} parent=1 // pred_region
      _
    $region9: #{interpolation_forward.1} parent=1 // pred_fallthru
      _
    // Predicated region
    $region10: #{interpolation_forward.1} parent=1 // pred_check
      _
    $region11: #{interpolation_forward.1} parent=1 // pred_check_branch
      %21 = sbr.rel (0) target = $region13
    $region12: #{interpolation_forward.1} parent=1 // pred_region
      _
    $region13: #{interpolation_forward.1} parent=1 // pred_fallthru
      _
    // Predicated region
    $region14: #{interpolation_forward.1} parent=1 // pred_check
      _
    $region15: #{interpolation_forward.1} parent=1 // pred_check_branch
      %23 = sbr.rel (0) target = $region17
    $region16: #{interpolation_forward.1} parent=1 // pred_region
      %s25 = ssub.s32 1024, 1024
      %26 = vsyncadd [#allocation3], %s25
      %s27 = sshll.u32 [#allocation2], 4
      %s28 = int_to_ptr.vmem [resolvable:$true] %s27
      %33 = dma.hbm_to_vmem [thread:$0]  %s3, 1024, %s28, [#allocation3], 128, 128, 8
    $region17: #{interpolation_forward.1} parent=1 // pred_fallthru
      _
    // Predicated region
    $region18: #{interpolation_forward.1} parent=1 // pred_check
      _
    $region19: #{interpolation_forward.1} parent=1 // pred_check_branch
      %35 = sbr.rel (0) target = $region21
    $region20: #{interpolation_forward.1} parent=1 // pred_region
      %s37 = ssub.s32 1024, 1024
      %38 = vsyncadd [#allocation5], %s37
      %s39 = sshll.u32 [#allocation4], 4
      %s40 = int_to_ptr.vmem [resolvable:$true] %s39
      %45 = dma.hbm_to_vmem [thread:$0]  %s4, 1024, %s40, [#allocation5], 128, 128, 8
    $region21: #{interpolation_forward.1} parent=1 // pred_fallthru
      _
    // Predicated region
    $region22: #{interpolation_forward.1} parent=1 // pred_check
      _
    $region23: #{interpolation_forward.1} parent=1 // pred_check_branch
      %47 = sbr.rel (0) target = $region25
    $region24: #{interpolation_forward.1} parent=1 // pred_region
      %s49 = ssub.s32 1024, 1024
      %50 = vsyncadd [#allocation5], %s49
      %s51 = sshll.u32 [#allocation6], 4
      %s52 = int_to_ptr.vmem [resolvable:$true] %s51
      %57 = dma.hbm_to_vmem [thread:$0]  %s5, 1024, %s52, [#allocation5], 128, 128, 8
    $region25: #{interpolation_forward.1} parent=1 // pred_fallthru
      _
    // Predicated region
    $region26: #{interpolation_forward.1} parent=1 // pred_check
      _
    $region27: #{interpolation_forward.1} parent=1 // pred_check_branch
      %59 = sbr.rel (0) target = $region29
    $region28: #{interpolation_forward.1} parent=1 // pred_region
      %s61 = ssub.s32 1024, 1024
      %62 = vsyncadd [#allocation8], %s61
      %s63 = sshll.u32 [#allocation7], 4
      %s64 = int_to_ptr.vmem [resolvable:$true] %s63
      %69 = dma.hbm_to_vmem [thread:$0]  %s6, 1024, %s64, [#allocation8], 128, 128, 8
    $region29: #{interpolation_forward.1} parent=1 // pred_fallthru
      _
    // Predicated region
    $region30: #{interpolation_forward.1} parent=1 // pred_check
      _
    $region31: #{interpolation_forward.1} parent=1 // pred_check_branch
      %71 = sbr.rel (0) target = $region33
    $region32: #{interpolation_forward.1} parent=1 // pred_region
      %s73 = ssub.s32 256, 256
      %74 = vsyncadd [#allocation8], %s73
      %s76 = sshll.u32 [#allocation9], 4
      %s77 = int_to_ptr.vmem [resolvable:$true] %s76
      %79 = dma.hbm_to_vmem [thread:$0]  %s7, 256, %s77, [#allocation8]
    $region33: #{interpolation_forward.1} parent=1 // pred_fallthru
      _
    // Predicated region
    $region34: #{interpolation_forward.1} parent=1 // pred_check
      _
    $region35: #{interpolation_forward.1} parent=1 // pred_check_branch
      %81 = sbr.rel (0) target = $region37
    $region36: #{interpolation_forward.1} parent=1 // pred_region
      %82 = dma.done [#allocation3], 1024
    $region37: #{interpolation_forward.1} parent=1 // pred_fallthru
      _
    // Predicated region
    $region38: #{interpolation_forward.1} parent=1 // pred_check
      _
    $region39: #{interpolation_forward.1} parent=1 // pred_check_branch
      %84 = sbr.rel (0) target = $region41
    $region40: #{interpolation_forward.1} parent=1 // pred_region
      %85 = dma.done [#allocation5], 1024
    $region41: #{interpolation_forward.1} parent=1 // pred_fallthru
      _
    // Predicated region
    $region42: #{interpolation_forward.1} parent=1 // pred_check
      _
    $region43: #{interpolation_forward.1} parent=1 // pred_check_branch
      %87 = sbr.rel (0) target = $region45
    $region44: #{interpolation_forward.1} parent=1 // pred_region
      %88 = dma.done [#allocation5], 1024
    $region45: #{interpolation_forward.1} parent=1 // pred_fallthru
      _
    // Predicated region
    $region46: #{interpolation_forward.1} parent=1 // pred_check
      _
    $region47: #{interpolation_forward.1} parent=1 // pred_check_branch
      %90 = sbr.rel (0) target = $region49
    $region48: #{interpolation_forward.1} parent=1 // pred_region
      %91 = dma.done [#allocation8], 1024
    $region49: #{interpolation_forward.1} parent=1 // pred_fallthru
      _
    // Predicated region
    $region50: #{interpolation_forward.1} parent=1 // pred_check
      _
    $region51: #{interpolation_forward.1} parent=1 // pred_check_branch
      %93 = sbr.rel (0) target = $region53
    $region52: #{interpolation_forward.1} parent=1 // pred_region
      %94 = dma.done [#allocation8], 256
    $region53: #{interpolation_forward.1} parent=1 // pred_fallthru
      _
    %v96 = vld [vmem:[#allocation9] sm:$0xff]
    %v97 = vld [vmem:[#allocation9 + $0x8] sm:$0xff]
    %v98 = vld [vmem:[%s0] sm:$0x3]
    %v99 = vpack.c.bf16 %v98, %v98
    %v100 = vld [vmem:[%s1] sm:$0xf]
    %v101 = vld [vmem:[%s1 + $0x4] sm:$0xf]
    %v102 = vlaneseq
    %v103 = vshrl.u32 %v102, 7
    %v104 = vsub.s32 5, %v103
    %v105 = vrot.slane %v96, %v104
    %107 = vrot.lane.b32.xlu0 %v99, 112
    %v108 = vpop.permute.xlu0 %107
    %v111 = vunpack.c.l.b16 %v100
    %v112 = vunpack.c.l.b16 %v101
    %v113 = vpack.c.b16 %v112, %v111
    %vm115 = vcmask 130048
    %v117 = vsel %vm115, %v108, 0
    %119 = vmatprep.subr.bf16.mxu0 0
    %120 = vmatpush1.bf16.msra.mxu0 0
    %121 = vmatprep.subr.bf16.mxu0 0
    %122 = vmatpush1.bf16.msra.mxu0 0
    %123 = vmatprep.subr.bf16.mxu0 0
    %124 = vmatpush1.bf16.msra.mxu0 0
    %125 = vmatprep.subr.bf16.mxu0 0
    %126 = vmatpush1.bf16.msra.mxu0 0
    %127 = vmatprep.subr.bf16.mxu0 0
    %128 = vmatpush1.bf16.msra.mxu0 0
    %129 = vmatprep.subr.bf16.mxu0 0
    %130 = vmatpush1.bf16.msra.mxu0 0
    %131 = vmatprep.subr.bf16.mxu0 0
    %132 = vmatpush1.bf16.msra.mxu0 0
    %133 = vmatprep.subr.bf16.mxu0 0
    %134 = vmatpush1.bf16.msra.mxu0 %v113
    %135 = vmatprep.subr.bf16.mxu0 0
    %136 = vmatpush2.bf16.msra.mxu0 0
    %137 = vmatprep.subr.bf16.mxu0 0
    %138 = vmatpush2.bf16.msra.mxu0 0
    %139 = vmatprep.subr.bf16.mxu0 0
    %140 = vmatpush2.bf16.msra.mxu0 0
    %141 = vmatprep.subr.bf16.mxu0 0
    %142 = vmatpush2.bf16.msra.mxu0 0
    %143 = vmatprep.subr.bf16.mxu0 0
    %144 = vmatpush2.bf16.msra.mxu0 0
    %145 = vmatprep.subr.bf16.mxu0 0
    %146 = vmatpush2.bf16.msra.mxu0 0
    %147 = vmatprep.subr.bf16.mxu0 0
    %148 = vmatpush2.bf16.msra.mxu0 0
    %149 = vmatprep.subr.bf16.mxu0 0
    %150 = vmatpush2.bf16.msra.mxu0 0
    %151 = vmatprep.mubr.bf16.mxu0 0
    %152 = vmatmul.mubr.bf16.gmra.mxu0 %v117
    %v153 = vpop.f32.mrf.mxu0
    %v154 = vadd.f32 %v105, %v153
    %v155 = vpop.f32.mrf.mxu0
    %v156 = vpop.f32.mrf.mxu0
    %v157 = vpop.f32.mrf.mxu0
    %158 = vdwg.mxu0
    %v159 = vld [vmem:[%s2] sm:$0xff]
    %v160 = vld [vmem:[%s2 + $0x8] sm:$0xff]
    %v161 = vlaneseq
    %v162 = vshrl.u32 %v161, 7
    %v163 = vsub.s32 0, %v162
    %v164 = vrot.slane %v96, %v163
    %v165 = vlaneseq
    %v166 = vshrl.u32 %v165, 7
    %v167 = vsub.s32 0, %v166
    %v168 = vrot.slane %v97, %v167
    %v171 = vunpack.c.l.b16 %v159
    %v172 = vunpack.c.h.b16 %v159
    %v173 = vunpack.c.l.b16 %v160
    %v174 = vunpack.c.h.b16 %v160
    %v175 = vpack.c.b16 %v173, %v171
    %v176 = vpack.c.b16 %v174, %v172
    %v180 = vsel %vm115, %v99, 0
    %182 = vmatprep.subr.bf16.mxu0 0
    %183 = vmatpush1.bf16.msra.mxu0 0
    %184 = vmatprep.subr.bf16.mxu0 0
    %185 = vmatpush1.bf16.msra.mxu0 0
    %186 = vmatprep.subr.bf16.mxu0 0
    %187 = vmatpush1.bf16.msra.mxu0 0
    %188 = vmatprep.subr.bf16.mxu0 0
    %189 = vmatpush1.bf16.msra.mxu0 0
    %190 = vmatprep.subr.bf16.mxu0 0
    %191 = vmatpush1.bf16.msra.mxu0 0
    %192 = vmatprep.subr.bf16.mxu0 0
    %193 = vmatpush1.bf16.msra.mxu0 0
    %194 = vmatprep.subr.bf16.mxu0 0
    %195 = vmatpush1.bf16.msra.mxu0 0
    %196 = vmatprep.subr.bf16.mxu0 %v176
    %197 = vmatpush1.bf16.msra.mxu0 %v175
    %198 = vmatprep.subr.bf16.mxu0 0
    %199 = vmatpush2.bf16.msra.mxu0 0
    %200 = vmatprep.subr.bf16.mxu0 0
    %201 = vmatpush2.bf16.msra.mxu0 0
    %202 = vmatprep.subr.bf16.mxu0 0
    %203 = vmatpush2.bf16.msra.mxu0 0
    %204 = vmatprep.subr.bf16.mxu0 0
    %205 = vmatpush2.bf16.msra.mxu0 0
    %206 = vmatprep.subr.bf16.mxu0 0
    %207 = vmatpush2.bf16.msra.mxu0 0
    %208 = vmatprep.subr.bf16.mxu0 0
    %209 = vmatpush2.bf16.msra.mxu0 0
    %210 = vmatprep.subr.bf16.mxu0 0
    %211 = vmatpush2.bf16.msra.mxu0 0
    %212 = vmatprep.subr.bf16.mxu0 0
    %213 = vmatpush2.bf16.msra.mxu0 0
    %214 = vmatprep.mubr.bf16.mxu0 0
    %215 = vmatmul.mubr.bf16.gmra.mxu0 %v180
    %v216 = vpop.f32.mrf.mxu0
    %v217 = vadd.f32 %v164, %v216
    %v218 = vpop.f32.mrf.mxu0
    %v219 = vadd.f32 %v168, %v218
    %v220 = vpop.f32.mrf.mxu0
    %v221 = vpop.f32.mrf.mxu0
    %222 = vdwg.mxu0
    %v223 = vpack.c.bf16 %v154, %v154
    %v224 = vld [vmem:[#allocation2] sm:$0xff]
    %v225 = vld [vmem:[#allocation2 + $0x8] sm:$0xff]
    %v226 = vld [vmem:[#allocation2 + $0x10] sm:$0xff]
    %v227 = vld [vmem:[#allocation2 + $0x18] sm:$0xff]
    %v228 = vld [vmem:[#allocation2 + $0x20] sm:$0xff]
    %v229 = vld [vmem:[#allocation2 + $0x28] sm:$0xff]
    %v230 = vld [vmem:[#allocation2 + $0x30] sm:$0xff]
    %v231 = vld [vmem:[#allocation2 + $0x38] sm:$0xff]
    %v240 = vunpack.c.l.b16 %v224
    %v241 = vunpack.c.h.b16 %v224
    %v242 = vunpack.c.l.b16 %v225
    %v243 = vunpack.c.h.b16 %v225
    %v244 = vunpack.c.l.b16 %v226
    %v245 = vunpack.c.h.b16 %v226
    %v246 = vunpack.c.l.b16 %v227
    %v247 = vunpack.c.h.b16 %v227
    %v248 = vunpack.c.l.b16 %v228
    %v249 = vunpack.c.h.b16 %v228
    %v250 = vunpack.c.l.b16 %v229
    %v251 = vunpack.c.h.b16 %v229
    %v252 = vunpack.c.l.b16 %v230
    %v253 = vunpack.c.h.b16 %v230
    %v254 = vunpack.c.l.b16 %v231
    %v255 = vunpack.c.h.b16 %v231
    %v256 = vpack.c.b16 %v242, %v240
    %v257 = vpack.c.b16 %v243, %v241
    %v258 = vpack.c.b16 %v246, %v244
    %v259 = vpack.c.b16 %v247, %v245
    %v260 = vpack.c.b16 %v250, %v248
    %v261 = vpack.c.b16 %v251, %v249
    %v262 = vpack.c.b16 %v254, %v252
    %v263 = vpack.c.b16 %v255, %v253
    %vm272 = vcmask 523264
    %v274 = vsel %vm272, %v223, 0
    %276 = vmatprep.subr.bf16.mxu0 0
    %277 = vmatpush1.bf16.msra.mxu0 0
    %278 = vmatprep.subr.bf16.mxu0 0
    %279 = vmatpush1.bf16.msra.mxu0 0
    %280 = vmatprep.subr.bf16.mxu0 0
    %281 = vmatpush1.bf16.msra.mxu0 0
    %282 = vmatprep.subr.bf16.mxu0 0
    %283 = vmatpush1.bf16.msra.mxu0 0
    %284 = vmatprep.subr.bf16.mxu0 %v263
    %285 = vmatpush1.bf16.msra.mxu0 %v262
    %286 = vmatprep.subr.bf16.mxu0 %v261
    %287 = vmatpush1.bf16.msra.mxu0 %v260
    %288 = vmatprep.subr.bf16.mxu0 %v259
    %289 = vmatpush1.bf16.msra.mxu0 %v258
    %290 = vmatprep.subr.bf16.mxu0 %v257
    %291 = vmatpush1.bf16.msra.mxu0 %v256
    %292 = vmatprep.subr.bf16.mxu0 0
    %293 = vmatpush2.bf16.msra.mxu0 0
    %294 = vmatprep.subr.bf16.mxu0 0
    %295 = vmatpush2.bf16.msra.mxu0 0
    %296 = vmatprep.subr.bf16.mxu0 0
    %297 = vmatpush2.bf16.msra.mxu0 0
    %298 = vmatprep.subr.bf16.mxu0 0
    %299 = vmatpush2.bf16.msra.mxu0 0
    %300 = vmatprep.subr.bf16.mxu0 0
    %301 = vmatpush2.bf16.msra.mxu0 0
    %302 = vmatprep.subr.bf16.mxu0 0
    %303 = vmatpush2.bf16.msra.mxu0 0
    %304 = vmatprep.subr.bf16.mxu0 0
    %305 = vmatpush2.bf16.msra.mxu0 0
    %306 = vmatprep.subr.bf16.mxu0 0
    %307 = vmatpush2.bf16.msra.mxu0 0
    %308 = vmatprep.mubr.bf16.mxu0 0
    %309 = vmatmul.mubr.bf16.gmra.mxu0 %v274
    %v310 = vpop.f32.mrf.mxu0
    %v311 = vadd.f32 0.0, %v310
    %v312 = vpop.f32.mrf.mxu0
    %v313 = vadd.f32 0.0, %v312
    %v314 = vpop.f32.mrf.mxu0
    %v315 = vpop.f32.mrf.mxu0
    %316 = vdwg.mxu0
    %v317 = vadd.f32 %v217, %v311
    %v318 = vxor.u32 %v317, 2147483648
    %v319 = vmul.f32 %v318, 1.442695
    %v320 = vpow.pop %v319
    %v321 = vadd.f32 %v320, 1.0
    %v322 = vrcp.pop %v321
    %v323 = vmul.f32 1.0, %v322
    %v324 = vlaneseq
    %v325 = vshrl.u32 %v324, 7
    %v326 = vsub.s32 1, %v325
    %v327 = vrot.slane %v96, %v326
    %v328 = vadd.f32 %v313, %v327
    %v329 = vmul.f32 %v323, %v328
    %v330 = vadd.f32 %v219, %v329
    %v331 = vtanh.pop %v330
    %v332 = vsub.f32 1.0, %v323
    %334 = vrot.lane.b32.xlu0 %v331, 64
    %v335 = vpop.permute.xlu0 %334
    %v337 = vmul.f32 %v332, %v335
    %339 = vrot.lane.b32.xlu0 %v154, 64
    %v340 = vpop.permute.xlu0 %339
    %v342 = vmul.f32 %v323, %v340
    %v343 = vadd.f32 %v337, %v342
    %v344 = vpack.c.bf16 %v343, %v343
    %v345 = vld [vmem:[#allocation4] sm:$0xff]
    %v346 = vld [vmem:[#allocation4 + $0x8] sm:$0xff]
    %v347 = vld [vmem:[#allocation4 + $0x10] sm:$0xff]
    %v348 = vld [vmem:[#allocation4 + $0x18] sm:$0xff]
    %v349 = vld [vmem:[#allocation4 + $0x20] sm:$0xff]
    %v350 = vld [vmem:[#allocation4 + $0x28] sm:$0xff]
    %v351 = vld [vmem:[#allocation4 + $0x30] sm:$0xff]
    %v352 = vld [vmem:[#allocation4 + $0x38] sm:$0xff]
    %v353 = vlaneseq
    %v354 = vshrl.u32 %v353, 7
    %v355 = vsub.s32 2, %v354
    %v356 = vrot.slane %v96, %v355
    %v357 = vlaneseq
    %v358 = vshrl.u32 %v357, 7
    %v359 = vsub.s32 2, %v358
    %v360 = vrot.slane %v97, %v359
    %362 = vrot.lane.b32.xlu0 %v344, 64
    %v363 = vpop.permute.xlu0 %362
    %v372 = vunpack.c.l.b16 %v345
    %v373 = vunpack.c.h.b16 %v345
    %v374 = vunpack.c.l.b16 %v346
    %v375 = vunpack.c.h.b16 %v346
    %v376 = vunpack.c.l.b16 %v347
    %v377 = vunpack.c.h.b16 %v347
    %v378 = vunpack.c.l.b16 %v348
    %v379 = vunpack.c.h.b16 %v348
    %v380 = vunpack.c.l.b16 %v349
    %v381 = vunpack.c.h.b16 %v349
    %v382 = vunpack.c.l.b16 %v350
    %v383 = vunpack.c.h.b16 %v350
    %v384 = vunpack.c.l.b16 %v351
    %v385 = vunpack.c.h.b16 %v351
    %v386 = vunpack.c.l.b16 %v352
    %v387 = vunpack.c.h.b16 %v352
    %v388 = vpack.c.b16 %v374, %v372
    %v389 = vpack.c.b16 %v375, %v373
    %v390 = vpack.c.b16 %v378, %v376
    %v391 = vpack.c.b16 %v379, %v377
    %v392 = vpack.c.b16 %v382, %v380
    %v393 = vpack.c.b16 %v383, %v381
    %v394 = vpack.c.b16 %v386, %v384
    %v395 = vpack.c.b16 %v387, %v385
    %v405 = vsel %vm272, %v363, 0
    %407 = vmatprep.subr.bf16.mxu0 0
    %408 = vmatpush1.bf16.msra.mxu0 0
    %409 = vmatprep.subr.bf16.mxu0 0
    %410 = vmatpush1.bf16.msra.mxu0 0
    %411 = vmatprep.subr.bf16.mxu0 0
    %412 = vmatpush1.bf16.msra.mxu0 0
    %413 = vmatprep.subr.bf16.mxu0 0
    %414 = vmatpush1.bf16.msra.mxu0 0
    %415 = vmatprep.subr.bf16.mxu0 %v395
    %416 = vmatpush1.bf16.msra.mxu0 %v394
    %417 = vmatprep.subr.bf16.mxu0 %v393
    %418 = vmatpush1.bf16.msra.mxu0 %v392
    %419 = vmatprep.subr.bf16.mxu0 %v391
    %420 = vmatpush1.bf16.msra.mxu0 %v390
    %421 = vmatprep.subr.bf16.mxu0 %v389
    %422 = vmatpush1.bf16.msra.mxu0 %v388
    %423 = vmatprep.subr.bf16.mxu0 0
    %424 = vmatpush2.bf16.msra.mxu0 0
    %425 = vmatprep.subr.bf16.mxu0 0
    %426 = vmatpush2.bf16.msra.mxu0 0
    %427 = vmatprep.subr.bf16.mxu0 0
    %428 = vmatpush2.bf16.msra.mxu0 0
    %429 = vmatprep.subr.bf16.mxu0 0
    %430 = vmatpush2.bf16.msra.mxu0 0
    %431 = vmatprep.subr.bf16.mxu0 0
    %432 = vmatpush2.bf16.msra.mxu0 0
    %433 = vmatprep.subr.bf16.mxu0 0
    %434 = vmatpush2.bf16.msra.mxu0 0
    %435 = vmatprep.subr.bf16.mxu0 0
    %436 = vmatpush2.bf16.msra.mxu0 0
    %437 = vmatprep.subr.bf16.mxu0 0
    %438 = vmatpush2.bf16.msra.mxu0 0
    %439 = vmatprep.mubr.bf16.mxu0 0
    %440 = vmatmul.mubr.bf16.gmra.mxu0 %v405
    %v441 = vpop.f32.mrf.mxu0
    %v442 = vadd.f32 %v356, %v441
    %v443 = vpop.f32.mrf.mxu0
    %v444 = vadd.f32 %v360, %v443
    %v445 = vpop.f32.mrf.mxu0
    %v446 = vpop.f32.mrf.mxu0
    %447 = vdwg.mxu0
    %v448 = vld [vmem:[#allocation6] sm:$0xff]
    %v449 = vld [vmem:[#allocation6 + $0x8] sm:$0xff]
    %v450 = vld [vmem:[#allocation6 + $0x10] sm:$0xff]
    %v451 = vld [vmem:[#allocation6 + $0x18] sm:$0xff]
    %v452 = vld [vmem:[#allocation6 + $0x20] sm:$0xff]
    %v453 = vld [vmem:[#allocation6 + $0x28] sm:$0xff]
    %v454 = vld [vmem:[#allocation6 + $0x30] sm:$0xff]
    %v455 = vld [vmem:[#allocation6 + $0x38] sm:$0xff]
    %v464 = vunpack.c.l.b16 %v448
    %v465 = vunpack.c.h.b16 %v448
    %v466 = vunpack.c.l.b16 %v449
    %v467 = vunpack.c.h.b16 %v449
    %v468 = vunpack.c.l.b16 %v450
    %v469 = vunpack.c.h.b16 %v450
    %v470 = vunpack.c.l.b16 %v451
    %v471 = vunpack.c.h.b16 %v451
    %v472 = vunpack.c.l.b16 %v452
    %v473 = vunpack.c.h.b16 %v452
    %v474 = vunpack.c.l.b16 %v453
    %v475 = vunpack.c.h.b16 %v453
    %v476 = vunpack.c.l.b16 %v454
    %v477 = vunpack.c.h.b16 %v454
    %v478 = vunpack.c.l.b16 %v455
    %v479 = vunpack.c.h.b16 %v455
    %v480 = vpack.c.b16 %v466, %v464
    %v481 = vpack.c.b16 %v467, %v465
    %v482 = vpack.c.b16 %v470, %v468
    %v483 = vpack.c.b16 %v471, %v469
    %v484 = vpack.c.b16 %v474, %v472
    %v485 = vpack.c.b16 %v475, %v473
    %v486 = vpack.c.b16 %v478, %v476
    %v487 = vpack.c.b16 %v479, %v477
    %496 = vmatprep.subr.bf16.mxu0 0
    %497 = vmatpush1.bf16.msra.mxu0 0
    %498 = vmatprep.subr.bf16.mxu0 0
    %499 = vmatpush1.bf16.msra.mxu0 0
    %500 = vmatprep.subr.bf16.mxu0 0
    %501 = vmatpush1.bf16.msra.mxu0 0
    %502 = vmatprep.subr.bf16.mxu0 0
    %503 = vmatpush1.bf16.msra.mxu0 0
    %504 = vmatprep.subr.bf16.mxu0 %v487
    %505 = vmatpush1.bf16.msra.mxu0 %v486
    %506 = vmatprep.subr.bf16.mxu0 %v485
    %507 = vmatpush1.bf16.msra.mxu0 %v484
    %508 = vmatprep.subr.bf16.mxu0 %v483
    %509 = vmatpush1.bf16.msra.mxu0 %v482
    %510 = vmatprep.subr.bf16.mxu0 %v481
    %511 = vmatpush1.bf16.msra.mxu0 %v480
    %512 = vmatprep.subr.bf16.mxu0 0
    %513 = vmatpush2.bf16.msra.mxu0 0
    %514 = vmatprep.subr.bf16.mxu0 0
    %515 = vmatpush2.bf16.msra.mxu0 0
    %516 = vmatprep.subr.bf16.mxu0 0
    %517 = vmatpush2.bf16.msra.mxu0 0
    %518 = vmatprep.subr.bf16.mxu0 0
    %519 = vmatpush2.bf16.msra.mxu0 0
    %520 = vmatprep.subr.bf16.mxu0 0
    %521 = vmatpush2.bf16.msra.mxu0 0
    %522 = vmatprep.subr.bf16.mxu0 0
    %523 = vmatpush2.bf16.msra.mxu0 0
    %524 = vmatprep.subr.bf16.mxu0 0
    %525 = vmatpush2.bf16.msra.mxu0 0
    %526 = vmatprep.subr.bf16.mxu0 0
    %527 = vmatpush2.bf16.msra.mxu0 0
    %528 = vmatprep.mubr.bf16.mxu0 0
    %529 = vmatmul.mubr.bf16.gmra.mxu0 %v405
    %v530 = vpop.f32.mrf.mxu0
    %v531 = vadd.f32 0.0, %v530
    %v532 = vpop.f32.mrf.mxu0
    %v533 = vadd.f32 0.0, %v532
    %v534 = vpop.f32.mrf.mxu0
    %v535 = vpop.f32.mrf.mxu0
    %536 = vdwg.mxu0
    %v537 = vadd.f32 %v442, %v531
    %v538 = vxor.u32 %v537, 2147483648
    %v539 = vmul.f32 %v538, 1.442695
    %v540 = vpow.pop %v539
    %v541 = vadd.f32 %v540, 1.0
    %v542 = vrcp.pop %v541
    %v543 = vmul.f32 1.0, %v542
    %v544 = vlaneseq
    %v545 = vshrl.u32 %v544, 7
    %v546 = vsub.s32 3, %v545
    %v547 = vrot.slane %v96, %v546
    %v548 = vadd.f32 %v533, %v547
    %v549 = vmul.f32 %v543, %v548
    %v550 = vadd.f32 %v444, %v549
    %v551 = vtanh.pop %v550
    %v552 = vsub.f32 1.0, %v543
    %554 = vrot.lane.b32.xlu0 %v551, 64
    %v555 = vpop.permute.xlu0 %554
    %v557 = vmul.f32 %v552, %v555
    %v558 = vmul.f32 %v543, %v343
    %v559 = vadd.f32 %v557, %v558
    %v560 = vpack.c.bf16 %v559, %v559
    %v561 = vld [vmem:[#allocation7] sm:$0xff]
    %v562 = vld [vmem:[#allocation7 + $0x8] sm:$0xff]
    %v563 = vld [vmem:[#allocation7 + $0x10] sm:$0xff]
    %v564 = vld [vmem:[#allocation7 + $0x18] sm:$0xff]
    %v565 = vld [vmem:[#allocation7 + $0x20] sm:$0xff]
    %v566 = vld [vmem:[#allocation7 + $0x28] sm:$0xff]
    %v567 = vld [vmem:[#allocation7 + $0x30] sm:$0xff]
    %v568 = vld [vmem:[#allocation7 + $0x38] sm:$0xff]
    %v569 = vlaneseq
    %v570 = vshrl.u32 %v569, 7
    %v571 = vsub.s32 4, %v570
    %v572 = vrot.slane %v96, %v571
    %v573 = vlaneseq
    %v574 = vshrl.u32 %v573, 7
    %v575 = vsub.s32 4, %v574
    %v576 = vrot.slane %v97, %v575
    %578 = vrot.lane.b32.xlu0 %v560, 64
    %v579 = vpop.permute.xlu0 %578
    %v588 = vunpack.c.l.b16 %v561
    %v589 = vunpack.c.h.b16 %v561
    %v590 = vunpack.c.l.b16 %v562
    %v591 = vunpack.c.h.b16 %v562
    %v592 = vunpack.c.l.b16 %v563
    %v593 = vunpack.c.h.b16 %v563
    %v594 = vunpack.c.l.b16 %v564
    %v595 = vunpack.c.h.b16 %v564
    %v596 = vunpack.c.l.b16 %v565
    %v597 = vunpack.c.h.b16 %v565
    %v598 = vunpack.c.l.b16 %v566
    %v599 = vunpack.c.h.b16 %v566
    %v600 = vunpack.c.l.b16 %v567
    %v601 = vunpack.c.h.b16 %v567
    %v602 = vunpack.c.l.b16 %v568
    %v603 = vunpack.c.h.b16 %v568
    %v604 = vpack.c.b16 %v590, %v588
    %v605 = vpack.c.b16 %v591, %v589
    %v606 = vpack.c.b16 %v594, %v592
    %v607 = vpack.c.b16 %v595, %v593
    %v608 = vpack.c.b16 %v598, %v596
    %v609 = vpack.c.b16 %v599, %v597
    %v610 = vpack.c.b16 %v602, %v600
    %v611 = vpack.c.b16 %v603, %v601
    %v621 = vsel %vm272, %v579, 0
    %623 = vmatprep.subr.bf16.mxu0 0
    %624 = vmatpush1.bf16.msra.mxu0 0
    %625 = vmatprep.subr.bf16.mxu0 0
    %626 = vmatpush1.bf16.msra.mxu0 0
    %627 = vmatprep.subr.bf16.mxu0 0
    %628 = vmatpush1.bf16.msra.mxu0 0
    %629 = vmatprep.subr.bf16.mxu0 0
    %630 = vmatpush1.bf16.msra.mxu0 0
    %631 = vmatprep.subr.bf16.mxu0 %v611
    %632 = vmatpush1.bf16.msra.mxu0 %v610
    %633 = vmatprep.subr.bf16.mxu0 %v609
    %634 = vmatpush1.bf16.msra.mxu0 %v608
    %635 = vmatprep.subr.bf16.mxu0 %v607
    %636 = vmatpush1.bf16.msra.mxu0 %v606
    %637 = vmatprep.subr.bf16.mxu0 %v605
    %638 = vmatpush1.bf16.msra.mxu0 %v604
    %639 = vmatprep.subr.bf16.mxu0 0
    %640 = vmatpush2.bf16.msra.mxu0 0
    %641 = vmatprep.subr.bf16.mxu0 0
    %642 = vmatpush2.bf16.msra.mxu0 0
    %643 = vmatprep.subr.bf16.mxu0 0
    %644 = vmatpush2.bf16.msra.mxu0 0
    %645 = vmatprep.subr.bf16.mxu0 0
    %646 = vmatpush2.bf16.msra.mxu0 0
    %647 = vmatprep.subr.bf16.mxu0 0
    %648 = vmatpush2.bf16.msra.mxu0 0
    %649 = vmatprep.subr.bf16.mxu0 0
    %650 = vmatpush2.bf16.msra.mxu0 0
    %651 = vmatprep.subr.bf16.mxu0 0
    %652 = vmatpush2.bf16.msra.mxu0 0
    %653 = vmatprep.subr.bf16.mxu0 0
    %654 = vmatpush2.bf16.msra.mxu0 0
    %655 = vmatprep.mubr.bf16.mxu0 0
    %656 = vmatmul.mubr.bf16.gmra.mxu0 %v621
    %v657 = vpop.f32.mrf.mxu0
    %v658 = vadd.f32 %v572, %v657
    %v659 = vpop.f32.mrf.mxu0
    %v660 = vadd.f32 %v576, %v659
    %v661 = vpop.f32.mrf.mxu0
    %v662 = vpop.f32.mrf.mxu0
    %663 = vdwg.mxu0
    %v666 = vcombine.low %v658, %v660
    %v668 = vunpack.c.l.s4 1983009808
    %v669 = vunpack.c.0.s8 %v668
    %v670 = vlaneseq
    %v671 = vshrl.u32 %v670, 7
    %v672 = vsub.s32 %v669, %v671
    %v673 = vrot.slane %v666, %v672
    %675 = vst [vmem:[%s8] sm:$0xf] %v673
    %v678 = vunpack.c.l.s4 1983009808
    %v679 = vunpack.c.0.s8 %v678
    %v680 = vlaneseq
    %v681 = vshrl.u32 %v680, 7
    %v682 = vsub.s32 %v679, %v681
    %v683 = vrot.slane %v343, %v682
    %684 = vrot.lane.b32.xlu0 %v683, 64
    %v685 = vpop.permute.xlu0 %684
    %vm687 = vcmask 517120
    %688 = vst.msk [vmem:[%s8 + $0x4] sm:$0x3] %vm687, %v685
    %vm689 = vcmask 1041920
    %690 = vst.msk [vmem:[%s8 + $0x4] sm:$0x3] %vm689, %v559
    // Predicated region
    $region54: #{interpolation_forward.1} parent=1 // pred_check
      _
    $region55: #{interpolation_forward.1} parent=1 // pred_check_branch
      %692 = sbr.rel (0) target = $region57
    $region56: #{interpolation_forward.1} parent=1 // pred_region
      _
    $region57: #{interpolation_forward.1} parent=1 // pred_fallthru
      _
    // Predicated region
    $region58: #{interpolation_forward.1} parent=1 // pred_check
      _
    $region59: #{interpolation_forward.1} parent=1 // pred_check_branch
      %694 = sbr.rel (0) target = $region61
    $region60: #{interpolation_forward.1} parent=1 // pred_region
      _
    $region61: #{interpolation_forward.1} parent=1 // pred_fallthru
      _
    %695 = vsyncpa [#allocation3], 1
    %696 = vsyncpa [#allocation5], 1
    %697 = vsyncpa [#allocation8], 1

</llo_original>
